<compile_context>
chip_gen: v7x
topology: tpu7x:2x2x1
jax: 0.10.0
libtpu: 0.0.40
codegen_flags: <defaults>
</compile_context>

<pallas_src>
import functools

import jax
import jax.numpy as jnp
from jax.experimental import pallas as pl
from jax.experimental.pallas import tpu as pltpu

STATE_DIM = 29
HIDDEN_DIM = 256
HEAD_PAD = 128          # 256->1 head padded to 128 output lanes (MXU dot)
INIT_W = 0.003


def value_net_kernel(x_ref, w1_ref, b1_ref, w2_ref, b2_ref, w3_ref, b3_ref,
                     o_ref, *, ew_dtype):
    # Layer 1: f32 MXU dot (K=29 is tiny; keeps parity with the f32 reference).
    h1 = jnp.dot(x_ref[...], w1_ref[...], preferred_element_type=jnp.float32)
    # Bias + ReLU in ew_dtype (bf16 on v6e/v7x, f32 on v5e); feed MXU in bf16.
    h1 = jnp.maximum(h1.astype(ew_dtype) + b1_ref[...], 0.0)
    h1 = h1.astype(jnp.bfloat16)

    # Layer 2: bf16 MXU operands, f32 accumulation.
    h2 = jnp.dot(h1, w2_ref[...], preferred_element_type=jnp.float32)
    h2 = jnp.maximum(h2.astype(ew_dtype) + b2_ref[...], 0.0)
    h2 = h2.astype(jnp.bfloat16)

    # Head 256 -> 1 as an MXU dot against a (256, 128) matrix whose column 0
    # holds the real weights (rest zero) -- avoids the cross-lane XLU reduce.
    head = jnp.dot(h2, w3_ref[...], preferred_element_type=jnp.float32)
    o_ref[...] = (head[:, 0:1] + b3_ref[0]).astype(o_ref.dtype)


def _default_elementwise_dtype():
    """bf16 elementwise on chips with a bf16 VPU (v6e/v7x), f32 elsewhere."""
    try:
        kind = jax.devices()[0].device_kind.lower()
    except Exception:  # pragma: no cover - defensive
        kind = ""
    if "v6" in kind or "v7" in kind:
        return jnp.bfloat16
    return jnp.float32


def prepare_params(params, elementwise_dtype=None):
    """One-time conversion of the f32 params into kernel-ready buffers.

    Hoisted out of the forward call so per-step weight pad/cast passes are not
    re-executed on every (microsecond-scale) invocation.
    """
    if elementwise_dtype is None:
        elementwise_dtype = _default_elementwise_dtype()
    w3_pad = jnp.zeros((HIDDEN_DIM, HEAD_PAD), jnp.bfloat16)
    w3_pad = w3_pad.at[:, 0].set(params["w3"][:, 0].astype(jnp.bfloat16))
    return {
        "w1": params["w1"].astype(jnp.float32),             # (29, 256) f32
        "b1": params["b1"].astype(elementwise_dtype),       # (1, 256)
        "w2": params["w2"].astype(jnp.bfloat16),            # (256, 256) bf16
        "b2": params["b2"].astype(elementwise_dtype),       # (1, 256)
        "w3": w3_pad,                                       # (256, 128) bf16
        "b3": params["b3"].reshape(1).astype(jnp.float32),  # (1,) SMEM scalar
    }


def value_network_forward(state, prepared, *, tile_m=2048):
    """state: (B, STATE_DIM) f32.  prepared: dict from prepare_params."""
    b = state.shape[0]
    # Tile choice: aim for >=2 grid steps (megacore sharding on v7x), round up
    # to a multiple of 128, cap at tile_m. Ragged final block is fine: rows are
    # independent and Pallas masks out-of-bounds output writes.
    tm = max(128, min(tile_m, pl.cdiv(pl.cdiv(b, 2), 128) * 128))
    grid = (pl.cdiv(b, tm),)
    ew_dtype = prepared["b1"].dtype

    const = lambda i: (0, 0)   # weights/biases resident across grid steps
    kernel = functools.partial(value_net_kernel, ew_dtype=ew_dtype)

    # NOTE(synk): pl.Buffered(1) on the constant-index weight specs would shave
    # ~150 KiB of redundant double-buffer VMEM; skipped as negligible here.
    out = pl.pallas_call(
        kernel,
        out_shape=jax.ShapeDtypeStruct((b, 1), jnp.float32),
        grid=grid,
        in_specs=[
            pl.BlockSpec((tm, STATE_DIM), lambda i: (i, 0)),      # state tile
            pl.BlockSpec((STATE_DIM, HIDDEN_DIM), const),         # w1 (f32)
            pl.BlockSpec((1, HIDDEN_DIM), const),                 # b1
            pl.BlockSpec((HIDDEN_DIM, HIDDEN_DIM), const),        # w2 (bf16)
            pl.BlockSpec((1, HIDDEN_DIM), const),                 # b2
            pl.BlockSpec((HIDDEN_DIM, HEAD_PAD), const),          # w3 padded
            pl.BlockSpec((1,), lambda i: (0,),
                         memory_space=pltpu.MemorySpace.SMEM),    # b3 scalar
        ],
        out_specs=pl.BlockSpec((tm, 1), lambda i: (i, 0)),
        compiler_params=pltpu.CompilerParams(
            dimension_semantics=("parallel",)),
    )(state, prepared["w1"], prepared["b1"], prepared["w2"],
      prepared["b2"], prepared["w3"], prepared["b3"])
    return out


def init_params(key):
    """Deterministic init mirroring PyTorch nn.Linear defaults.

    linear1/linear2: U(-1/sqrt(fan_in), 1/sqrt(fan_in)) for weight and bias.
    linear3: weight & bias overridden to U(-init_w, init_w).
    Weights are stored transposed, i.e. (in_features, out_features), in f32.
    """
    k1, k2, k3, k4, k5, k6 = jax.random.split(key, 6)

    bound1 = 1.0 / jnp.sqrt(STATE_DIM)
    w1 = jax.random.uniform(k1, (STATE_DIM, HIDDEN_DIM), jnp.float32,
                            -bound1, bound1)
    b1 = jax.random.uniform(k2, (1, HIDDEN_DIM), jnp.float32, -bound1, bound1)

    bound2 = 1.0 / jnp.sqrt(HIDDEN_DIM)
    w2 = jax.random.uniform(k3, (HIDDEN_DIM, HIDDEN_DIM), jnp.float32,
                            -bound2, bound2)
    b2 = jax.random.uniform(k4, (1, HIDDEN_DIM), jnp.float32, -bound2, bound2)

    w3 = jax.random.uniform(k5, (HIDDEN_DIM, 1), jnp.float32, -INIT_W, INIT_W)
    b3 = jax.random.uniform(k6, (1, 1), jnp.float32, -INIT_W, INIT_W)

    return {"w1": w1, "b1": b1, "w2": w2, "b2": b2, "w3": w3, "b3": b3}


def value_network_ref(state, params):
    h1 = jnp.maximum(state @ params["w1"] + params["b1"], 0.0)
    h2 = jnp.maximum(h1 @ params["w2"] + params["b2"], 0.0)
    return h2 @ params["w3"] + params["b3"]


if __name__ == "__main__":
    key = jax.random.PRNGKey(0)
    pkey, xkey = jax.random.split(key)

    params = init_params(pkey)
    prepared = prepare_params(params)   # one-time weight prep (hoisted)

    batch = 2
    state = jax.random.normal(xkey, (batch, STATE_DIM), jnp.float32)

    out = value_network_forward(state, prepared)
    out = jax.block_until_ready(out)

    ref = value_network_ref(state, params)
    assert out.shape == (batch, 1), out.shape
    # bf16 MXU operands for layers 2/3 (f32 accumulate, f32 layer 1) => slightly
    # looser tolerance vs the pure-f32 reference.
    assert jnp.allclose(out, ref, atol=2e-3, rtol=2e-2), (out, ref)

    print("KERNEL_OK")
</pallas_src>

<mosaic_0001>
module attributes {stable_mosaic.version = 11 : i64} {
  func.func @value_net_kernel(%arg0: i32, %arg1: memref<128x29xf32, #tpu.memory_space<vmem>>, %arg2: memref<29x256xf32, #tpu.memory_space<vmem>>, %arg3: memref<1x256xf32, #tpu.memory_space<vmem>>, %arg4: memref<256x256xbf16, #tpu.memory_space<vmem>>, %arg5: memref<1x256xf32, #tpu.memory_space<vmem>>, %arg6: memref<256x128xbf16, #tpu.memory_space<vmem>>, %arg7: memref<1xf32, #tpu.memory_space<smem>>, %arg8: memref<128x1xf32, #tpu.memory_space<vmem>>) attributes {dimension_semantics = [#tpu.dimension_semantics<parallel>], iteration_bounds = array<i64: 1>, scalar_prefetch = 0 : i64, scratch_operands = 0 : i64, tpu.core_type = #tpu.core_type<tc>, window_params = [{transform_indices = @transform_0, window_bounds = array<i64: 128, 29>}, {pipeline_mode = #tpu.pipeline_mode<synchronous>, transform_indices = @transform_1, window_bounds = array<i64: 29, 256>}, {pipeline_mode = #tpu.pipeline_mode<synchronous>, transform_indices = @transform_2, window_bounds = array<i64: 1, 256>}, {pipeline_mode = #tpu.pipeline_mode<synchronous>, transform_indices = @transform_3, window_bounds = array<i64: 256, 256>}, {pipeline_mode = #tpu.pipeline_mode<synchronous>, transform_indices = @transform_4, window_bounds = array<i64: 1, 256>}, {pipeline_mode = #tpu.pipeline_mode<synchronous>, transform_indices = @transform_5, window_bounds = array<i64: 256, 128>}, {transform_indices = @transform_6, window_bounds = array<i64: 1>}, {transform_indices = @transform_7, window_bounds = array<i64: 128, 1>}]} {
    %c0 = arith.constant 0 : index
    %c0_0 = arith.constant 0 : index
    %0 = vector.load %arg1[%c0, %c0_0] : memref<128x29xf32, #tpu.memory_space<vmem>>, vector<128x29xf32>
    %c0_1 = arith.constant 0 : index
    %c0_2 = arith.constant 0 : index
    %1 = vector.load %arg2[%c0_1, %c0_2] : memref<29x256xf32, #tpu.memory_space<vmem>>, vector<29x256xf32>
    %cst = arith.constant dense<0.000000e+00> : vector<128x256xf32>
    %2 = tpu.matmul %0, %1, %cst {dimension_numbers = #tpu.dot_dimension_numbers<[1], [0], [0], [1], [0, 0, 1, 1], [], []>} : vector<128x29xf32>, vector<29x256xf32>, vector<128x256xf32> -> vector<128x256xf32>
    %c0_3 = arith.constant 0 : index
    %c0_4 = arith.constant 0 : index
    %3 = vector.load %arg3[%c0_3, %c0_4] : memref<1x256xf32, #tpu.memory_space<vmem>>, vector<1x256xf32>
    %4 = vector.broadcast %3 : vector<1x256xf32> to vector<128x256xf32>
    %5 = arith.addf %2, %4 : vector<128x256xf32>
    %cst_5 = arith.constant 0.000000e+00 : f32
    %6 = vector.broadcast %cst_5 : f32 to vector<128x256xf32>
    %7 = arith.maximumf %5, %6 : vector<128x256xf32>
    %8 = arith.truncf %7 : vector<128x256xf32> to vector<128x256xbf16>
    %c0_6 = arith.constant 0 : index
    %c0_7 = arith.constant 0 : index
    %9 = vector.load %arg4[%c0_6, %c0_7] : memref<256x256xbf16, #tpu.memory_space<vmem>>, vector<256x256xbf16>
    %cst_8 = arith.constant dense<0.000000e+00> : vector<128x256xf32>
    %10 = tpu.matmul %8, %9, %cst_8 {dimension_numbers = #tpu.dot_dimension_numbers<[1], [0], [0], [1], [0, 0, 1, 1], [], []>} : vector<128x256xbf16>, vector<256x256xbf16>, vector<128x256xf32> -> vector<128x256xf32>
    %c0_9 = arith.constant 0 : index
    %c0_10 = arith.constant 0 : index
    %11 = vector.load %arg5[%c0_9, %c0_10] : memref<1x256xf32, #tpu.memory_space<vmem>>, vector<1x256xf32>
    %12 = vector.broadcast %11 : vector<1x256xf32> to vector<128x256xf32>
    %13 = arith.addf %10, %12 : vector<128x256xf32>
    %cst_11 = arith.constant 0.000000e+00 : f32
    %14 = vector.broadcast %cst_11 : f32 to vector<128x256xf32>
    %15 = arith.maximumf %13, %14 : vector<128x256xf32>
    %16 = arith.truncf %15 : vector<128x256xf32> to vector<128x256xbf16>
    %c0_12 = arith.constant 0 : index
    %c0_13 = arith.constant 0 : index
    %17 = vector.load %arg6[%c0_12, %c0_13] : memref<256x128xbf16, #tpu.memory_space<vmem>>, vector<256x128xbf16>
    %cst_14 = arith.constant dense<0.000000e+00> : vector<128x128xf32>
    %18 = tpu.matmul %16, %17, %cst_14 {dimension_numbers = #tpu.dot_dimension_numbers<[1], [0], [0], [1], [0, 0, 1, 1], [], []>} : vector<128x256xbf16>, vector<256x128xbf16>, vector<128x128xf32> -> vector<128x128xf32>
    %19 = vector.extract_strided_slice %18 {offsets = [0, 0], sizes = [128, 1], strides = [1, 1]} : vector<128x128xf32> to vector<128x1xf32>
    %c0_15 = arith.constant 0 : index
    %20 = memref.load %arg7[%c0_15] : memref<1xf32, #tpu.memory_space<smem>>
    %21 = vector.broadcast %20 : f32 to vector<128x1xf32>
    %22 = arith.addf %19, %21 : vector<128x1xf32>
    %c0_16 = arith.constant 0 : index
    %c0_17 = arith.constant 0 : index
    %23 = vector.load %arg8[%c0_16, %c0_17] : memref<128x1xf32, #tpu.memory_space<vmem>>, vector<128x1xf32>
    tpu.vector_store %arg8[%c0_16, %c0_17], %22 {strides = array<i32>} : memref<128x1xf32, #tpu.memory_space<vmem>>, vector<128x1xf32>,
    return
  }
  func.func @transform_0(%arg0: i32) -> (i32, i32) {
    %c0_i32 = arith.constant 0 : i32
    %c0_i32_0 = arith.constant 0 : i32
    return %arg0, %c0_i32 : i32, i32
  }
  func.func @transform_1(%arg0: i32) -> (i32, i32) {
    %c0_i32 = arith.constant 0 : i32
    %c0_i32_0 = arith.constant 0 : i32
    %c0_i32_1 = arith.constant 0 : i32
    return %c0_i32, %c0_i32_0 : i32, i32
  }
  func.func @transform_2(%arg0: i32) -> (i32, i32) {
    %c0_i32 = arith.constant 0 : i32
    %c0_i32_0 = arith.constant 0 : i32
    %c0_i32_1 = arith.constant 0 : i32
    return %c0_i32, %c0_i32_0 : i32, i32
  }
  func.func @transform_3(%arg0: i32) -> (i32, i32) {
    %c0_i32 = arith.constant 0 : i32
    %c0_i32_0 = arith.constant 0 : i32
    %c0_i32_1 = arith.constant 0 : i32
    return %c0_i32, %c0_i32_0 : i32, i32
  }
  func.func @transform_4(%arg0: i32) -> (i32, i32) {
    %c0_i32 = arith.constant 0 : i32
    %c0_i32_0 = arith.constant 0 : i32
    %c0_i32_1 = arith.constant 0 : i32
    return %c0_i32, %c0_i32_0 : i32, i32
  }
  func.func @transform_5(%arg0: i32) -> (i32, i32) {
    %c0_i32 = arith.constant 0 : i32
    %c0_i32_0 = arith.constant 0 : i32
    %c0_i32_1 = arith.constant 0 : i32
    return %c0_i32, %c0_i32_0 : i32, i32
  }
  func.func @transform_6(%arg0: i32) -> i32 {
    %c0_i32 = arith.constant 0 : i32
    %c0_i32_0 = arith.constant 0 : i32
    return %c0_i32 : i32
  }
  func.func @transform_7(%arg0: i32) -> (i32, i32) {
    %c0_i32 = arith.constant 0 : i32
    %c0_i32_0 = arith.constant 0 : i32
    return %arg0, %c0_i32 : i32, i32
  }
}

</mosaic_0001>

<llo_original>
// kernel: tpu_custom_call.1
$region0: #{tpu_custom_call.1}
  #allocation0 [shape = 'u32[]', space=smem, size = 0x4, offset = 0x4, fixed_abs, tag = 'smem constant byte address 0x4 - core index']
  #allocation1 [shape = 'u32[144,128]{1,0:T(1,128)}', space=vmem, size = 0x12000, scoped, tag = 'internal scratch']
  #allocation2 [shape = 'f32[1]{0:T(128)S(6)}', space=smem, size = 0x200, scoped, tag = 'scoped memory for tpu_custom_call.1']
  %s0 = inlined_call_operand.vmem [shape: f32[2,29], index: 0, kind: input, shape index: {}]
  %s1 = inlined_call_operand.hbm [shape: f32[29,256], index: 1, kind: input, shape index: {}]
  %s2 = inlined_call_operand.vmem [shape: f32[1,256], index: 2, kind: input, shape index: {}]
  %s3 = inlined_call_operand.hbm [shape: bf16[256,256], index: 3, kind: input, shape index: {}]
  %s4 = inlined_call_operand.vmem [shape: f32[1,256], index: 4, kind: input, shape index: {}]
  %s5 = inlined_call_operand.hbm [shape: bf16[256,128], index: 5, kind: input, shape index: {}]
  %s6 = inlined_call_operand.<no memory space> [shape: f32[1], index: 6, kind: input, shape index: {}]
  %s7 = inlined_call_operand.vmem [shape: f32[2,1], index: 7, kind: output, shape index: {}]
  %s8 = sld [smem:[#allocation0]]
  $region80: #{tpu_custom_call.1} parent=0
    _
  %s10 = ssub.s32 1, %s8
  %s11 = scalar_select 0, %s10, %s8
  %12 = sst [smem:[#allocation2]] %s6
  $region1: #{tpu_custom_call.1} parent=0
    #allocation3 [shape = 'u8[32768]{0}', space=vmem, size = 0x8000, scoped, tag = 'input window, operand 1, single buffered']
    #allocation4 [shape = 's32[1]{0}', space=sflag, size = 0x4, scoped, tag = 'scoped memory for tpu_custom_call.1']
    #allocation5 [shape = 'u8[131072]{0}', space=vmem, size = 0x20000, scoped, tag = 'input window, operand 3, single buffered']
    #allocation6 [shape = 's32[1]{0}', space=sflag, size = 0x4, scoped, tag = 'scoped memory for tpu_custom_call.1']
    #allocation7 [shape = 'u8[65536]{0}', space=vmem, size = 0x10000, scoped, tag = 'input window, operand 5, single buffered']
    #allocation8 [shape = 'u8[65536]{0}', space=vmem, size = 0x10000, scoped, tag = 'output window, operand 0, single buffered']
    %13 = vsyncpa [#allocation4], 0
    %14 = vsyncpa [#allocation6], 0
    // Predicated region
    $region2: #{tpu_custom_call.1} parent=1 // pred_check
      _
    $region3: #{tpu_custom_call.1} parent=1 // pred_check_branch
      %16 = sbr.rel (0) target = $region5
    $region4: #{tpu_custom_call.1} parent=1 // pred_region
      _
    $region5: #{tpu_custom_call.1} parent=1 // pred_fallthru
      _
    // Predicated region
    $region6: #{tpu_custom_call.1} parent=1 // pred_check
      _
    $region7: #{tpu_custom_call.1} parent=1 // pred_check_branch
      %18 = sbr.rel (0) target = $region9
    $region8: #{tpu_custom_call.1} parent=1 // pred_region
      %s20 = ssub.s32 1024, 1024
      %21 = vsyncadd [#allocation4], %s20
      %s22 = sshll.u32 [#allocation3], 4
      %s23 = int_to_ptr.vmem [resolvable:$true] %s22
      %28 = dma.hbm_to_vmem [thread:$0]  %s1, 1024, %s23, [#allocation4], 256, 256, 16
    $region9: #{tpu_custom_call.1} parent=1 // pred_fallthru
      _
    // Predicated region
    $region10: #{tpu_custom_call.1} parent=1 // pred_check
      _
    $region11: #{tpu_custom_call.1} parent=1 // pred_check_branch
      %30 = sbr.rel (0) target = $region13
    $region12: #{tpu_custom_call.1} parent=1 // pred_region
      _
    $region13: #{tpu_custom_call.1} parent=1 // pred_fallthru
      _
    // Predicated region
    $region14: #{tpu_custom_call.1} parent=1 // pred_check
      _
    $region15: #{tpu_custom_call.1} parent=1 // pred_check_branch
      %32 = sbr.rel (0) target = $region17
    $region16: #{tpu_custom_call.1} parent=1 // pred_region
      %s34 = ssub.s32 4096, 4096
      %35 = vsyncadd [#allocation6], %s34
      %s36 = sshll.u32 [#allocation5], 4
      %s37 = int_to_ptr.vmem [resolvable:$true] %s36
      %42 = dma.hbm_to_vmem [thread:$0]  %s3, 4096, %s37, [#allocation6], 128, 128, 8
    $region17: #{tpu_custom_call.1} parent=1 // pred_fallthru
      _
    // Predicated region
    $region18: #{tpu_custom_call.1} parent=1 // pred_check
      _
    $region19: #{tpu_custom_call.1} parent=1 // pred_check_branch
      %44 = sbr.rel (0) target = $region21
    $region20: #{tpu_custom_call.1} parent=1 // pred_region
      _
    $region21: #{tpu_custom_call.1} parent=1 // pred_fallthru
      _
    // Predicated region
    $region22: #{tpu_custom_call.1} parent=1 // pred_check
      _
    $region23: #{tpu_custom_call.1} parent=1 // pred_check_branch
      %46 = sbr.rel (0) target = $region25
    $region24: #{tpu_custom_call.1} parent=1 // pred_region
      %s48 = ssub.s32 2048, 2048
      %49 = vsyncadd [#allocation6], %s48
      %s50 = sshll.u32 [#allocation7], 4
      %s51 = int_to_ptr.vmem [resolvable:$true] %s50
      %56 = dma.hbm_to_vmem [thread:$0]  %s5, 2048, %s51, [#allocation6], 64, 64, 4
    $region25: #{tpu_custom_call.1} parent=1 // pred_fallthru
      _
    // Predicated region
    $region26: #{tpu_custom_call.1} parent=1 // pred_check
      _
    $region27: #{tpu_custom_call.1} parent=1 // pred_check_branch
      %58 = sbr.rel (0) target = $region29
    $region28: #{tpu_custom_call.1} parent=1 // pred_region
      _
    $region29: #{tpu_custom_call.1} parent=1 // pred_fallthru
      _
    // Predicated region
    $region30: #{tpu_custom_call.1} parent=1 // pred_check
      _
    $region31: #{tpu_custom_call.1} parent=1 // pred_check_branch
      %60 = sbr.rel (0) target = $region33
    $region32: #{tpu_custom_call.1} parent=1 // pred_region
      %61 = dma.done [#allocation4], 1024
    $region33: #{tpu_custom_call.1} parent=1 // pred_fallthru
      _
    // Predicated region
    $region34: #{tpu_custom_call.1} parent=1 // pred_check
      _
    $region35: #{tpu_custom_call.1} parent=1 // pred_check_branch
      %63 = sbr.rel (0) target = $region37
    $region36: #{tpu_custom_call.1} parent=1 // pred_region
      %64 = dma.done [#allocation6], 4096
    $region37: #{tpu_custom_call.1} parent=1 // pred_fallthru
      _
    // Predicated region
    $region38: #{tpu_custom_call.1} parent=1 // pred_check
      _
    $region39: #{tpu_custom_call.1} parent=1 // pred_check_branch
      %66 = sbr.rel (0) target = $region41
    $region40: #{tpu_custom_call.1} parent=1 // pred_region
      %67 = dma.done [#allocation6], 2048
    $region41: #{tpu_custom_call.1} parent=1 // pred_fallthru
      _
    %v69 = vld [vmem:[%s0] sm:$0xff]
    %v70 = vld [vmem:[%s0 + $0x8] sm:$0xff]
    %v71 = vld [vmem:[%s0 + $0x10] sm:$0xff]
    %v72 = vld [vmem:[%s0 + $0x18] sm:$0xff]
    %v73 = vld [vmem:[%s0 + $0x20] sm:$0xff]
    %v74 = vld [vmem:[%s0 + $0x28] sm:$0xff]
    %v75 = vld [vmem:[%s0 + $0x30] sm:$0xff]
    %v76 = vld [vmem:[%s0 + $0x38] sm:$0xff]
    %v77 = vld [vmem:[%s0 + $0x40] sm:$0xff]
    %v78 = vld [vmem:[%s0 + $0x48] sm:$0xff]
    %v79 = vld [vmem:[%s0 + $0x50] sm:$0xff]
    %v80 = vld [vmem:[%s0 + $0x58] sm:$0xff]
    %v81 = vld [vmem:[%s0 + $0x60] sm:$0xff]
    %v82 = vld [vmem:[%s0 + $0x68] sm:$0xff]
    %v83 = vld [vmem:[%s0 + $0x70] sm:$0xff]
    %v84 = vld [vmem:[%s0 + $0x78] sm:$0xff]
    %v85 = vld [vmem:[#allocation3] sm:$0xff]
    %v86 = vld [vmem:[#allocation3 + $0x8] sm:$0xff]
    %v87 = vld [vmem:[#allocation3 + $0x10] sm:$0xff]
    %v88 = vld [vmem:[#allocation3 + $0x18] sm:$0xff]
    %v89 = vld [vmem:[#allocation3 + $0x20] sm:$0xff]
    %v90 = vld [vmem:[#allocation3 + $0x28] sm:$0xff]
    %v91 = vld [vmem:[#allocation3 + $0x30] sm:$0x1f]
    %v92 = vld [vmem:[#allocation3 + $0x38] sm:$0x1f]
    %v93 = vld [vmem:[%s2] sm:$0x3]
    %v95 = vlaneseq
    %v96 = vshrl.u32 %v95, 7
    %v97 = vsub.s32 0, %v96
    %v98 = vrot.slane %v93, %v97
    %v99 = vlaneseq
    %v100 = vshrl.u32 %v99, 7
    %v101 = vsub.s32 1, %v100
    %v102 = vrot.slane %v93, %v101
    %vm105 = vcmask 236544
    %v107 = vsel %vm105, %v69, 0
    %v110 = vsel %vm105, %v70, 0
    %v113 = vsel %vm105, %v71, 0
    %v116 = vsel %vm105, %v72, 0
    %v119 = vsel %vm105, %v73, 0
    %v122 = vsel %vm105, %v74, 0
    %v125 = vsel %vm105, %v75, 0
    %v128 = vsel %vm105, %v76, 0
    %v131 = vsel %vm105, %v77, 0
    %v134 = vsel %vm105, %v78, 0
    %v137 = vsel %vm105, %v79, 0
    %v140 = vsel %vm105, %v80, 0
    %v143 = vsel %vm105, %v81, 0
    %v146 = vsel %vm105, %v82, 0
    %v149 = vsel %vm105, %v83, 0
    %v152 = vsel %vm105, %v84, 0
    %vm154 = vcmask 1044480
    %v156 = vsel %vm154, %v91, 0
    %v159 = vsel %vm154, %v92, 0
    %161 = vmatprep.subr.mxu0 %v86
    %162 = vmatpush1.msra.mxu0 %v85
    %163 = vmatprep.subr.mxu0 %v88
    %164 = vmatpush1.msra.mxu0 %v87
    %165 = vmatprep.subr.mxu0 %v90
    %166 = vmatpush1.msra.mxu0 %v89
    %167 = vmatprep.subr.mxu0 %v159
    %168 = vmatpush1.msra.mxu0 %v156
    %169 = vmatprep.subr.mxu0 0.0
    %170 = vmatpush1.msra.mxu0 0.0
    %171 = vmatprep.subr.mxu0 0.0
    %172 = vmatpush1.msra.mxu0 0.0
    %173 = vmatprep.subr.mxu0 0.0
    %174 = vmatpush1.msra.mxu0 0.0
    %175 = vmatprep.subr.mxu0 0.0
    %176 = vmatpush1.msra.mxu0 0.0
    %177 = vmatprep.subr.mxu0 0.0
    %178 = vmatpush1.msra.mxu0 0.0
    %179 = vmatprep.subr.mxu0 0.0
    %180 = vmatpush1.msra.mxu0 0.0
    %181 = vmatprep.subr.mxu0 0.0
    %182 = vmatpush1.msra.mxu0 0.0
    %183 = vmatprep.subr.mxu0 0.0
    %184 = vmatpush1.msra.mxu0 0.0
    %185 = vmatprep.subr.mxu0 0.0
    %186 = vmatpush1.msra.mxu0 0.0
    %187 = vmatprep.subr.mxu0 0.0
    %188 = vmatpush1.msra.mxu0 0.0
    %189 = vmatprep.subr.mxu0 0.0
    %190 = vmatpush1.msra.mxu0 0.0
    %191 = vmatprep.subr.mxu0 0.0
    %192 = vmatpush1.msra.mxu0 0.0
    %193 = vmatprep.subr.mxu0 0.0
    %194 = vmatpush1.msra.mxu0 0.0
    %195 = vmatprep.subr.mxu0 0.0
    %196 = vmatpush1.msra.mxu0 0.0
    %197 = vmatprep.subr.mxu0 0.0
    %198 = vmatpush1.msra.mxu0 0.0
    %199 = vmatprep.subr.mxu0 0.0
    %200 = vmatpush1.msra.mxu0 0.0
    %201 = vmatprep.subr.mxu0 0.0
    %202 = vmatpush1.msra.mxu0 0.0
    %203 = vmatprep.subr.mxu0 0.0
    %204 = vmatpush1.msra.mxu0 0.0
    %205 = vmatprep.subr.mxu0 0.0
    %206 = vmatpush1.msra.mxu0 0.0
    %207 = vmatprep.subr.mxu0 0.0
    %208 = vmatpush1.msra.mxu0 0.0
    %209 = vmatprep.subr.mxu0 0.0
    %210 = vmatpush1.msra.mxu0 0.0
    %211 = vmatprep.subr.mxu0 0.0
    %212 = vmatpush1.msra.mxu0 0.0
    %213 = vmatprep.subr.mxu0 0.0
    %214 = vmatpush1.msra.mxu0 0.0
    %215 = vmatprep.subr.mxu0 0.0
    %216 = vmatpush1.msra.mxu0 0.0
    %217 = vmatprep.subr.mxu0 0.0
    %218 = vmatpush1.msra.mxu0 0.0
    %219 = vmatprep.subr.mxu0 0.0
    %220 = vmatpush1.msra.mxu0 0.0
    %221 = vmatprep.subr.mxu0 0.0
    %222 = vmatpush1.msra.mxu0 0.0
    %223 = vmatprep.subr.mxu0 0.0
    %224 = vmatpush1.msra.mxu0 0.0
    %225 = vmatprep.mubr.f32.mxu0 0.0
    %226 = vmatmul.mubr.f32.gmra.mrb[0].mxu0 %v107
    %v227 = vpop.f32.mrb[0].mxu0
    %v228 = vadd.f32 %v98, %v227
    %v229 = vpop.f32.mrb[0].mxu0
    %v230 = vadd.f32 %v102, %v229
    %231 = vmatprep.mubr.f32.mxu0 0.0
    %232 = vmatmul.mubr.f32.gmra.mrb[0].mxu0 %v110
    %v233 = vpop.f32.mrb[0].mxu0
    %v234 = vadd.f32 %v98, %v233
    %v235 = vpop.f32.mrb[0].mxu0
    %v236 = vadd.f32 %v102, %v235
    %237 = vmatprep.mubr.f32.mxu0 0.0
    %238 = vmatmul.mubr.f32.gmra.mrb[0].mxu0 %v113
    %v239 = vpop.f32.mrb[0].mxu0
    %v240 = vadd.f32 %v98, %v239
    %v241 = vpop.f32.mrb[0].mxu0
    %v242 = vadd.f32 %v102, %v241
    %243 = vmatprep.mubr.f32.mxu0 0.0
    %244 = vmatmul.mubr.f32.gmra.mrb[0].mxu0 %v116
    %v245 = vpop.f32.mrb[0].mxu0
    %v246 = vadd.f32 %v98, %v245
    %v247 = vpop.f32.mrb[0].mxu0
    %v248 = vadd.f32 %v102, %v247
    %249 = vmatprep.mubr.f32.mxu0 0.0
    %250 = vmatmul.mubr.f32.gmra.mrb[0].mxu0 %v119
    %v251 = vpop.f32.mrb[0].mxu0
    %v252 = vadd.f32 %v98, %v251
    %v253 = vpop.f32.mrb[0].mxu0
    %v254 = vadd.f32 %v102, %v253
    %255 = vmatprep.mubr.f32.mxu0 0.0
    %256 = vmatmul.mubr.f32.gmra.mrb[0].mxu0 %v122
    %v257 = vpop.f32.mrb[0].mxu0
    %v258 = vadd.f32 %v98, %v257
    %v259 = vpop.f32.mrb[0].mxu0
    %v260 = vadd.f32 %v102, %v259
    %261 = vmatprep.mubr.f32.mxu0 0.0
    %262 = vmatmul.mubr.f32.gmra.mrb[0].mxu0 %v125
    %v263 = vpop.f32.mrb[0].mxu0
    %v264 = vadd.f32 %v98, %v263
    %v265 = vpop.f32.mrb[0].mxu0
    %v266 = vadd.f32 %v102, %v265
    %267 = vmatprep.mubr.f32.mxu0 0.0
    %268 = vmatmul.mubr.f32.gmra.mrb[0].mxu0 %v128
    %v269 = vpop.f32.mrb[0].mxu0
    %v270 = vadd.f32 %v98, %v269
    %v271 = vpop.f32.mrb[0].mxu0
    %v272 = vadd.f32 %v102, %v271
    %273 = vmatprep.mubr.f32.mxu0 0.0
    %274 = vmatmul.mubr.f32.gmra.mrb[0].mxu0 %v131
    %v275 = vpop.f32.mrb[0].mxu0
    %v276 = vadd.f32 %v98, %v275
    %v277 = vpop.f32.mrb[0].mxu0
    %v278 = vadd.f32 %v102, %v277
    %279 = vmatprep.mubr.f32.mxu0 0.0
    %280 = vmatmul.mubr.f32.gmra.mrb[0].mxu0 %v134
    %v281 = vpop.f32.mrb[0].mxu0
    %v282 = vadd.f32 %v98, %v281
    %v283 = vpop.f32.mrb[0].mxu0
    %v284 = vadd.f32 %v102, %v283
    %285 = vmatprep.mubr.f32.mxu0 0.0
    %286 = vmatmul.mubr.f32.gmra.mrb[0].mxu0 %v137
    %v287 = vpop.f32.mrb[0].mxu0
    %v288 = vadd.f32 %v98, %v287
    %v289 = vpop.f32.mrb[0].mxu0
    %v290 = vadd.f32 %v102, %v289
    %291 = vmatprep.mubr.f32.mxu0 0.0
    %292 = vmatmul.mubr.f32.gmra.mrb[0].mxu0 %v140
    %v293 = vpop.f32.mrb[0].mxu0
    %v294 = vadd.f32 %v98, %v293
    %v295 = vpop.f32.mrb[0].mxu0
    %v296 = vadd.f32 %v102, %v295
    %297 = vmatprep.mubr.f32.mxu0 0.0
    %298 = vmatmul.mubr.f32.gmra.mrb[0].mxu0 %v143
    %v299 = vpop.f32.mrb[0].mxu0
    %v300 = vadd.f32 %v98, %v299
    %v301 = vpop.f32.mrb[0].mxu0
    %v302 = vadd.f32 %v102, %v301
    %303 = vmatprep.mubr.f32.mxu0 0.0
    %304 = vmatmul.mubr.f32.gmra.mrb[0].mxu0 %v146
    %v305 = vpop.f32.mrb[0].mxu0
    %v306 = vadd.f32 %v98, %v305
    %v307 = vpop.f32.mrb[0].mxu0
    %v308 = vadd.f32 %v102, %v307
    %309 = vmatprep.mubr.f32.mxu0 0.0
    %310 = vmatmul.mubr.f32.gmra.mrb[0].mxu0 %v149
    %v311 = vpop.f32.mrb[0].mxu0
    %v312 = vadd.f32 %v98, %v311
    %v313 = vpop.f32.mrb[0].mxu0
    %v314 = vadd.f32 %v102, %v313
    %315 = vmatprep.mubr.f32.mxu0 0.0
    %316 = vmatmul.mubr.f32.gmra.mrb[0].mxu0 %v152
    %v317 = vpop.f32.mrb[0].mxu0
    %v318 = vadd.f32 %v98, %v317
    %v319 = vpop.f32.mrb[0].mxu0
    %v320 = vadd.f32 %v102, %v319
    %321 = vdwg.mxu0
    %v322 = vmax.f32 %v228, 0.0
    %v323 = vmax.f32 %v230, 0.0
    %v324 = vmax.f32 %v234, 0.0
    %v325 = vmax.f32 %v236, 0.0
    %v326 = vmax.f32 %v240, 0.0
    %v327 = vmax.f32 %v242, 0.0
    %v328 = vmax.f32 %v246, 0.0
    %v329 = vmax.f32 %v248, 0.0
    %v330 = vmax.f32 %v252, 0.0
    %v331 = vmax.f32 %v254, 0.0
    %v332 = vmax.f32 %v258, 0.0
    %v333 = vmax.f32 %v260, 0.0
    %v334 = vmax.f32 %v264, 0.0
    %v335 = vmax.f32 %v266, 0.0
    %v336 = vmax.f32 %v270, 0.0
    %v337 = vmax.f32 %v272, 0.0
    %v338 = vmax.f32 %v276, 0.0
    %v339 = vmax.f32 %v278, 0.0
    %v340 = vmax.f32 %v282, 0.0
    %v341 = vmax.f32 %v284, 0.0
    %v342 = vmax.f32 %v288, 0.0
    %v343 = vmax.f32 %v290, 0.0
    %v344 = vmax.f32 %v294, 0.0
    %v345 = vmax.f32 %v296, 0.0
    %v346 = vmax.f32 %v300, 0.0
    %v347 = vmax.f32 %v302, 0.0
    %v348 = vmax.f32 %v306, 0.0
    %v349 = vmax.f32 %v308, 0.0
    %v350 = vmax.f32 %v312, 0.0
    %v351 = vmax.f32 %v314, 0.0
    %v352 = vmax.f32 %v318, 0.0
    %v353 = vmax.f32 %v320, 0.0
    %v354 = vpack.c.bf16 %v324, %v322
    %v355 = vpack.c.bf16 %v325, %v323
    %v356 = vpack.c.bf16 %v328, %v326
    %v357 = vpack.c.bf16 %v329, %v327
    %v358 = vpack.c.bf16 %v332, %v330
    %v359 = vpack.c.bf16 %v333, %v331
    %v360 = vpack.c.bf16 %v336, %v334
    %v361 = vpack.c.bf16 %v337, %v335
    %v362 = vpack.c.bf16 %v340, %v338
    %v363 = vpack.c.bf16 %v341, %v339
    %v364 = vpack.c.bf16 %v344, %v342
    %v365 = vpack.c.bf16 %v345, %v343
    %v366 = vpack.c.bf16 %v348, %v346
    %v367 = vpack.c.bf16 %v349, %v347
    %v368 = vpack.c.bf16 %v352, %v350
    %v369 = vpack.c.bf16 %v353, %v351
    %v370 = vld [vmem:[#allocation5] sm:$0xff]
    %v371 = vld [vmem:[#allocation5 + $0x8] sm:$0xff]
    %v372 = vld [vmem:[#allocation5 + $0x10] sm:$0xff]
    %v373 = vld [vmem:[#allocation5 + $0x18] sm:$0xff]
    %v374 = vld [vmem:[#allocation5 + $0x20] sm:$0xff]
    %v375 = vld [vmem:[#allocation5 + $0x28] sm:$0xff]
    %v376 = vld [vmem:[#allocation5 + $0x30] sm:$0xff]
    %v377 = vld [vmem:[#allocation5 + $0x38] sm:$0xff]
    %v378 = vld [vmem:[#allocation5 + $0x40] sm:$0xff]
    %v379 = vld [vmem:[#allocation5 + $0x48] sm:$0xff]
    %v380 = vld [vmem:[#allocation5 + $0x50] sm:$0xff]
    %v381 = vld [vmem:[#allocation5 + $0x58] sm:$0xff]
    %v382 = vld [vmem:[#allocation5 + $0x60] sm:$0xff]
    %v383 = vld [vmem:[#allocation5 + $0x68] sm:$0xff]
    %v384 = vld [vmem:[#allocation5 + $0x70] sm:$0xff]
    %v385 = vld [vmem:[#allocation5 + $0x78] sm:$0xff]
    %v386 = vld [vmem:[#allocation5 + $0x80] sm:$0xff]
    %v387 = vld [vmem:[#allocation5 + $0x88] sm:$0xff]
    %v388 = vld [vmem:[#allocation5 + $0x90] sm:$0xff]
    %v389 = vld [vmem:[#allocation5 + $0x98] sm:$0xff]
    %v390 = vld [vmem:[#allocation5 + $0xa0] sm:$0xff]
    %v391 = vld [vmem:[#allocation5 + $0xa8] sm:$0xff]
    %v392 = vld [vmem:[#allocation5 + $0xb0] sm:$0xff]
    %v393 = vld [vmem:[#allocation5 + $0xb8] sm:$0xff]
    %v394 = vld [vmem:[#allocation5 + $0xc0] sm:$0xff]
    %v395 = vld [vmem:[#allocation5 + $0xc8] sm:$0xff]
    %v396 = vld [vmem:[#allocation5 + $0xd0] sm:$0xff]
    %v397 = vld [vmem:[#allocation5 + $0xd8] sm:$0xff]
    %v398 = vld [vmem:[#allocation5 + $0xe0] sm:$0xff]
    %v399 = vld [vmem:[#allocation5 + $0xe8] sm:$0xff]
    %v400 = vld [vmem:[#allocation5 + $0xf0] sm:$0xff]
    %v401 = vld [vmem:[#allocation5 + $0xf8] sm:$0xff]
    %v402 = vld [vmem:[%s4] sm:$0x3]
    %v404 = vlaneseq
    %v405 = vshrl.u32 %v404, 7
    %v406 = vsub.s32 0, %v405
    %v407 = vrot.slane %v402, %v406
    %v408 = vlaneseq
    %v409 = vshrl.u32 %v408, 7
    %v410 = vsub.s32 1, %v409
    %v411 = vrot.slane %v402, %v410
    %v446 = vunpack.c.l.b16 %v370
    %v447 = vunpack.c.h.b16 %v370
    %v448 = vunpack.c.l.b16 %v371
    %v449 = vunpack.c.h.b16 %v371
    %v450 = vunpack.c.l.b16 %v372
    %v451 = vunpack.c.h.b16 %v372
    %v452 = vunpack.c.l.b16 %v373
    %v453 = vunpack.c.h.b16 %v373
    %v454 = vunpack.c.l.b16 %v374
    %v455 = vunpack.c.h.b16 %v374
    %v456 = vunpack.c.l.b16 %v375
    %v457 = vunpack.c.h.b16 %v375
    %v458 = vunpack.c.l.b16 %v376
    %v459 = vunpack.c.h.b16 %v376
    %v460 = vunpack.c.l.b16 %v377
    %v461 = vunpack.c.h.b16 %v377
    %v462 = vunpack.c.l.b16 %v378
    %v463 = vunpack.c.h.b16 %v378
    %v464 = vunpack.c.l.b16 %v379
    %v465 = vunpack.c.h.b16 %v379
    %v466 = vunpack.c.l.b16 %v380
    %v467 = vunpack.c.h.b16 %v380
    %v468 = vunpack.c.l.b16 %v381
    %v469 = vunpack.c.h.b16 %v381
    %v470 = vunpack.c.l.b16 %v382
    %v471 = vunpack.c.h.b16 %v382
    %v472 = vunpack.c.l.b16 %v383
    %v473 = vunpack.c.h.b16 %v383
    %v474 = vunpack.c.l.b16 %v384
    %v475 = vunpack.c.h.b16 %v384
    %v476 = vunpack.c.l.b16 %v385
    %v477 = vunpack.c.h.b16 %v385
    %v478 = vunpack.c.l.b16 %v386
    %v479 = vunpack.c.h.b16 %v386
    %v480 = vunpack.c.l.b16 %v387
    %v481 = vunpack.c.h.b16 %v387
    %v482 = vunpack.c.l.b16 %v388
    %v483 = vunpack.c.h.b16 %v388
    %v484 = vunpack.c.l.b16 %v389
    %v485 = vunpack.c.h.b16 %v389
    %v486 = vunpack.c.l.b16 %v390
    %v487 = vunpack.c.h.b16 %v390
    %v488 = vunpack.c.l.b16 %v391
    %v489 = vunpack.c.h.b16 %v391
    %v490 = vunpack.c.l.b16 %v392
    %v491 = vunpack.c.h.b16 %v392
    %v492 = vunpack.c.l.b16 %v393
    %v493 = vunpack.c.h.b16 %v393
    %v494 = vunpack.c.l.b16 %v394
    %v495 = vunpack.c.h.b16 %v394
    %v496 = vunpack.c.l.b16 %v395
    %v497 = vunpack.c.h.b16 %v395
    %v498 = vunpack.c.l.b16 %v396
    %v499 = vunpack.c.h.b16 %v396
    %v500 = vunpack.c.l.b16 %v397
    %v501 = vunpack.c.h.b16 %v397
    %v502 = vunpack.c.l.b16 %v398
    %v503 = vunpack.c.h.b16 %v398
    %v504 = vunpack.c.l.b16 %v399
    %v505 = vunpack.c.h.b16 %v399
    %v506 = vunpack.c.l.b16 %v400
    %v507 = vunpack.c.h.b16 %v400
    %v508 = vunpack.c.l.b16 %v401
    %v509 = vunpack.c.h.b16 %v401
    %v510 = vpack.c.b16 %v448, %v446
    %v511 = vpack.c.b16 %v449, %v447
    %v512 = vpack.c.b16 %v452, %v450
    %v513 = vpack.c.b16 %v453, %v451
    %v514 = vpack.c.b16 %v456, %v454
    %v515 = vpack.c.b16 %v457, %v455
    %v516 = vpack.c.b16 %v460, %v458
    %v517 = vpack.c.b16 %v461, %v459
    %v518 = vpack.c.b16 %v464, %v462
    %v519 = vpack.c.b16 %v465, %v463
    %v520 = vpack.c.b16 %v468, %v466
    %v521 = vpack.c.b16 %v469, %v467
    %v522 = vpack.c.b16 %v472, %v470
    %v523 = vpack.c.b16 %v473, %v471
    %v524 = vpack.c.b16 %v476, %v474
    %v525 = vpack.c.b16 %v477, %v475
    %v526 = vpack.c.b16 %v480, %v478
    %v527 = vpack.c.b16 %v481, %v479
    %v528 = vpack.c.b16 %v484, %v482
    %v529 = vpack.c.b16 %v485, %v483
    %v530 = vpack.c.b16 %v488, %v486
    %v531 = vpack.c.b16 %v489, %v487
    %v532 = vpack.c.b16 %v492, %v490
    %v533 = vpack.c.b16 %v493, %v491
    %v534 = vpack.c.b16 %v496, %v494
    %v535 = vpack.c.b16 %v497, %v495
    %v536 = vpack.c.b16 %v500, %v498
    %v537 = vpack.c.b16 %v501, %v499
    %v538 = vpack.c.b16 %v504, %v502
    %v539 = vpack.c.b16 %v505, %v503
    %v540 = vpack.c.b16 %v508, %v506
    %v541 = vpack.c.b16 %v509, %v507
    %574 = vmatprep.subr.bf16.mxu0 %v511
    %575 = vmatpush1.bf16.msra.mxu0 %v510
    %576 = vmatprep.subr.bf16.mxu0 %v513
    %577 = vmatpush1.bf16.msra.mxu0 %v512
    %578 = vmatprep.subr.bf16.mxu0 %v515
    %579 = vmatpush1.bf16.msra.mxu0 %v514
    %580 = vmatprep.subr.bf16.mxu0 %v517
    %581 = vmatpush1.bf16.msra.mxu0 %v516
    %582 = vmatprep.subr.bf16.mxu0 %v519
    %583 = vmatpush1.bf16.msra.mxu0 %v518
    %584 = vmatprep.subr.bf16.mxu0 %v521
    %585 = vmatpush1.bf16.msra.mxu0 %v520
    %586 = vmatprep.subr.bf16.mxu0 %v523
    %587 = vmatpush1.bf16.msra.mxu0 %v522
    %588 = vmatprep.subr.bf16.mxu0 %v525
    %589 = vmatpush1.bf16.msra.mxu0 %v524
    %590 = vmatprep.subr.bf16.mxu0 %v527
    %591 = vmatpush1.bf16.msra.mxu0 %v526
    %592 = vmatprep.subr.bf16.mxu0 %v529
    %593 = vmatpush1.bf16.msra.mxu0 %v528
    %594 = vmatprep.subr.bf16.mxu0 %v531
    %595 = vmatpush1.bf16.msra.mxu0 %v530
    %596 = vmatprep.subr.bf16.mxu0 %v533
    %597 = vmatpush1.bf16.msra.mxu0 %v532
    %598 = vmatprep.subr.bf16.mxu0 %v535
    %599 = vmatpush1.bf16.msra.mxu0 %v534
    %600 = vmatprep.subr.bf16.mxu0 %v537
    %601 = vmatpush1.bf16.msra.mxu0 %v536
    %602 = vmatprep.subr.bf16.mxu0 %v539
    %603 = vmatpush1.bf16.msra.mxu0 %v538
    %604 = vmatprep.subr.bf16.mxu0 %v541
    %605 = vmatpush1.bf16.msra.mxu0 %v540
    %606 = vmatprep.mubr.bf16.mxu0 %v355
    %607 = vmatmul.mubr.bf16.gmra.mrb[0].mxu0 %v354
    %v608 = vpop.f32.mrb[0].mxu0
    %v609 = vadd.f32 %v407, %v608
    %v610 = vpop.f32.mrb[0].mxu0
    %v611 = vadd.f32 %v411, %v610
    %v612 = vpop.f32.mrb[0].mxu0
    %v613 = vadd.f32 %v407, %v612
    %v614 = vpop.f32.mrb[0].mxu0
    %v615 = vadd.f32 %v411, %v614
    %616 = vmatprep.mubr.bf16.mxu0 %v357
    %617 = vmatmul.mubr.bf16.gmra.mrb[0].mxu0 %v356
    %v618 = vpop.f32.mrb[0].mxu0
    %v619 = vadd.f32 %v407, %v618
    %v620 = vpop.f32.mrb[0].mxu0
    %v621 = vadd.f32 %v411, %v620
    %v622 = vpop.f32.mrb[0].mxu0
    %v623 = vadd.f32 %v407, %v622
    %v624 = vpop.f32.mrb[0].mxu0
    %v625 = vadd.f32 %v411, %v624
    %626 = vmatprep.mubr.bf16.mxu0 %v359
    %627 = vmatmul.mubr.bf16.gmra.mrb[0].mxu0 %v358
    %v628 = vpop.f32.mrb[0].mxu0
    %v629 = vadd.f32 %v407, %v628
    %v630 = vpop.f32.mrb[0].mxu0
    %v631 = vadd.f32 %v411, %v630
    %v632 = vpop.f32.mrb[0].mxu0
    %v633 = vadd.f32 %v407, %v632
    %v634 = vpop.f32.mrb[0].mxu0
    %v635 = vadd.f32 %v411, %v634
    %636 = vmatprep.mubr.bf16.mxu0 %v361
    %637 = vmatmul.mubr.bf16.gmra.mrb[0].mxu0 %v360
    %v638 = vpop.f32.mrb[0].mxu0
    %v639 = vadd.f32 %v407, %v638
    %v640 = vpop.f32.mrb[0].mxu0
    %v641 = vadd.f32 %v411, %v640
    %v642 = vpop.f32.mrb[0].mxu0
    %v643 = vadd.f32 %v407, %v642
    %v644 = vpop.f32.mrb[0].mxu0
    %v645 = vadd.f32 %v411, %v644
    %646 = vmatprep.mubr.bf16.mxu0 %v363
    %647 = vmatmul.mubr.bf16.gmra.mrb[0].mxu0 %v362
    %v648 = vpop.f32.mrb[0].mxu0
    %v649 = vadd.f32 %v407, %v648
    %v650 = vpop.f32.mrb[0].mxu0
    %v651 = vadd.f32 %v411, %v650
    %v652 = vpop.f32.mrb[0].mxu0
    %v653 = vadd.f32 %v407, %v652
    %v654 = vpop.f32.mrb[0].mxu0
    %v655 = vadd.f32 %v411, %v654
    %656 = vmatprep.mubr.bf16.mxu0 %v365
    %657 = vmatmul.mubr.bf16.gmra.mrb[0].mxu0 %v364
    %v658 = vpop.f32.mrb[0].mxu0
    %v659 = vadd.f32 %v407, %v658
    %v660 = vpop.f32.mrb[0].mxu0
    %v661 = vadd.f32 %v411, %v660
    %v662 = vpop.f32.mrb[0].mxu0
    %v663 = vadd.f32 %v407, %v662
    %v664 = vpop.f32.mrb[0].mxu0
    %v665 = vadd.f32 %v411, %v664
    %666 = vmatprep.mubr.bf16.mxu0 %v367
    %667 = vmatmul.mubr.bf16.gmra.mrb[0].mxu0 %v366
    %v668 = vpop.f32.mrb[0].mxu0
    %v669 = vadd.f32 %v407, %v668
    %v670 = vpop.f32.mrb[0].mxu0
    %v671 = vadd.f32 %v411, %v670
    %v672 = vpop.f32.mrb[0].mxu0
    %v673 = vadd.f32 %v407, %v672
    %v674 = vpop.f32.mrb[0].mxu0
    %v675 = vadd.f32 %v411, %v674
    %676 = vmatprep.mubr.bf16.mxu0 %v369
    %677 = vmatmul.mubr.bf16.gmra.mrb[0].mxu0 %v368
    %v678 = vpop.f32.mrb[0].mxu0
    %v679 = vadd.f32 %v407, %v678
    %v680 = vpop.f32.mrb[0].mxu0
    %v681 = vadd.f32 %v411, %v680
    %v682 = vpop.f32.mrb[0].mxu0
    %v683 = vadd.f32 %v407, %v682
    %v684 = vpop.f32.mrb[0].mxu0
    %v685 = vadd.f32 %v411, %v684
    %686 = vdwg.mxu0
    %v687 = vmax.f32 %v609, 0.0
    %v688 = vmax.f32 %v611, 0.0
    %v689 = vmax.f32 %v613, 0.0
    %v690 = vmax.f32 %v615, 0.0
    %v691 = vmax.f32 %v619, 0.0
    %v692 = vmax.f32 %v621, 0.0
    %v693 = vmax.f32 %v623, 0.0
    %v694 = vmax.f32 %v625, 0.0
    %v695 = vmax.f32 %v629, 0.0
    %v696 = vmax.f32 %v631, 0.0
    %v697 = vmax.f32 %v633, 0.0
    %v698 = vmax.f32 %v635, 0.0
    %v699 = vmax.f32 %v639, 0.0
    %v700 = vmax.f32 %v641, 0.0
    %v701 = vmax.f32 %v643, 0.0
    %v702 = vmax.f32 %v645, 0.0
    %v703 = vmax.f32 %v649, 0.0
    %v704 = vmax.f32 %v651, 0.0
    %v705 = vmax.f32 %v653, 0.0
    %v706 = vmax.f32 %v655, 0.0
    %v707 = vmax.f32 %v659, 0.0
    %v708 = vmax.f32 %v661, 0.0
    %v709 = vmax.f32 %v663, 0.0
    %v710 = vmax.f32 %v665, 0.0
    %v711 = vmax.f32 %v669, 0.0
    %v712 = vmax.f32 %v671, 0.0
    %v713 = vmax.f32 %v673, 0.0
    %v714 = vmax.f32 %v675, 0.0
    %v715 = vmax.f32 %v679, 0.0
    %v716 = vmax.f32 %v681, 0.0
    %v717 = vmax.f32 %v683, 0.0
    %v718 = vmax.f32 %v685, 0.0
    %v719 = vpack.c.bf16 %v689, %v687
    %v720 = vpack.c.bf16 %v690, %v688
    %v721 = vpack.c.bf16 %v693, %v691
    %v722 = vpack.c.bf16 %v694, %v692
    %v723 = vpack.c.bf16 %v697, %v695
    %v724 = vpack.c.bf16 %v698, %v696
    %v725 = vpack.c.bf16 %v701, %v699
    %v726 = vpack.c.bf16 %v702, %v700
    %v727 = vpack.c.bf16 %v705, %v703
    %v728 = vpack.c.bf16 %v706, %v704
    %v729 = vpack.c.bf16 %v709, %v707
    %v730 = vpack.c.bf16 %v710, %v708
    %v731 = vpack.c.bf16 %v713, %v711
    %v732 = vpack.c.bf16 %v714, %v712
    %v733 = vpack.c.bf16 %v717, %v715
    %v734 = vpack.c.bf16 %v718, %v716
    %v735 = vld [vmem:[#allocation7] sm:$0xf]
    %v736 = vld [vmem:[#allocation7 + $0x4] sm:$0xf]
    %v737 = vld [vmem:[#allocation7 + $0x8] sm:$0xf]
    %v738 = vld [vmem:[#allocation7 + $0xc] sm:$0xf]
    %v739 = vld [vmem:[#allocation7 + $0x10] sm:$0xf]
    %v740 = vld [vmem:[#allocation7 + $0x14] sm:$0xf]
    %v741 = vld [vmem:[#allocation7 + $0x18] sm:$0xf]
    %v742 = vld [vmem:[#allocation7 + $0x1c] sm:$0xf]
    %v743 = vld [vmem:[#allocation7 + $0x20] sm:$0xf]
    %v744 = vld [vmem:[#allocation7 + $0x24] sm:$0xf]
    %v745 = vld [vmem:[#allocation7 + $0x28] sm:$0xf]
    %v746 = vld [vmem:[#allocation7 + $0x2c] sm:$0xf]
    %v747 = vld [vmem:[#allocation7 + $0x30] sm:$0xf]
    %v748 = vld [vmem:[#allocation7 + $0x34] sm:$0xf]
    %v749 = vld [vmem:[#allocation7 + $0x38] sm:$0xf]
    %v750 = vld [vmem:[#allocation7 + $0x3c] sm:$0xf]
    %v751 = vld [vmem:[#allocation7 + $0x40] sm:$0xf]
    %v752 = vld [vmem:[#allocation7 + $0x44] sm:$0xf]
    %v753 = vld [vmem:[#allocation7 + $0x48] sm:$0xf]
    %v754 = vld [vmem:[#allocation7 + $0x4c] sm:$0xf]
    %v755 = vld [vmem:[#allocation7 + $0x50] sm:$0xf]
    %v756 = vld [vmem:[#allocation7 + $0x54] sm:$0xf]
    %v757 = vld [vmem:[#allocation7 + $0x58] sm:$0xf]
    %v758 = vld [vmem:[#allocation7 + $0x5c] sm:$0xf]
    %v759 = vld [vmem:[#allocation7 + $0x60] sm:$0xf]
    %v760 = vld [vmem:[#allocation7 + $0x64] sm:$0xf]
    %v761 = vld [vmem:[#allocation7 + $0x68] sm:$0xf]
    %v762 = vld [vmem:[#allocation7 + $0x6c] sm:$0xf]
    %v763 = vld [vmem:[#allocation7 + $0x70] sm:$0xf]
    %v764 = vld [vmem:[#allocation7 + $0x74] sm:$0xf]
    %v765 = vld [vmem:[#allocation7 + $0x78] sm:$0xf]
    %v766 = vld [vmem:[#allocation7 + $0x7c] sm:$0xf]
    %v799 = vunpack.c.l.b16 %v735
    %v800 = vunpack.c.l.b16 %v736
    %v801 = vunpack.c.l.b16 %v737
    %v802 = vunpack.c.l.b16 %v738
    %v803 = vunpack.c.l.b16 %v739
    %v804 = vunpack.c.l.b16 %v740
    %v805 = vunpack.c.l.b16 %v741
    %v806 = vunpack.c.l.b16 %v742
    %v807 = vunpack.c.l.b16 %v743
    %v808 = vunpack.c.l.b16 %v744
    %v809 = vunpack.c.l.b16 %v745
    %v810 = vunpack.c.l.b16 %v746
    %v811 = vunpack.c.l.b16 %v747
    %v812 = vunpack.c.l.b16 %v748
    %v813 = vunpack.c.l.b16 %v749
    %v814 = vunpack.c.l.b16 %v750
    %v815 = vunpack.c.l.b16 %v751
    %v816 = vunpack.c.l.b16 %v752
    %v817 = vunpack.c.l.b16 %v753
    %v818 = vunpack.c.l.b16 %v754
    %v819 = vunpack.c.l.b16 %v755
    %v820 = vunpack.c.l.b16 %v756
    %v821 = vunpack.c.l.b16 %v757
    %v822 = vunpack.c.l.b16 %v758
    %v823 = vunpack.c.l.b16 %v759
    %v824 = vunpack.c.l.b16 %v760
    %v825 = vunpack.c.l.b16 %v761
    %v826 = vunpack.c.l.b16 %v762
    %v827 = vunpack.c.l.b16 %v763
    %v828 = vunpack.c.l.b16 %v764
    %v829 = vunpack.c.l.b16 %v765
    %v830 = vunpack.c.l.b16 %v766
    %v831 = vpack.c.b16 %v800, %v799
    %v832 = vpack.c.b16 %v802, %v801
    %v833 = vpack.c.b16 %v804, %v803
    %v834 = vpack.c.b16 %v806, %v805
    %v835 = vpack.c.b16 %v808, %v807
    %v836 = vpack.c.b16 %v810, %v809
    %v837 = vpack.c.b16 %v812, %v811
    %v838 = vpack.c.b16 %v814, %v813
    %v839 = vpack.c.b16 %v816, %v815
    %v840 = vpack.c.b16 %v818, %v817
    %v841 = vpack.c.b16 %v820, %v819
    %v842 = vpack.c.b16 %v822, %v821
    %v843 = vpack.c.b16 %v824, %v823
    %v844 = vpack.c.b16 %v826, %v825
    %v845 = vpack.c.b16 %v828, %v827
    %v846 = vpack.c.b16 %v830, %v829
    %863 = vmatprep.subr.bf16.mxu0 0
    %864 = vmatpush1.bf16.msra.mxu0 %v831
    %865 = vmatprep.subr.bf16.mxu0 0
    %866 = vmatpush1.bf16.msra.mxu0 %v832
    %867 = vmatprep.subr.bf16.mxu0 0
    %868 = vmatpush1.bf16.msra.mxu0 %v833
    %869 = vmatprep.subr.bf16.mxu0 0
    %870 = vmatpush1.bf16.msra.mxu0 %v834
    %871 = vmatprep.subr.bf16.mxu0 0
    %872 = vmatpush1.bf16.msra.mxu0 %v835
    %873 = vmatprep.subr.bf16.mxu0 0
    %874 = vmatpush1.bf16.msra.mxu0 %v836
    %875 = vmatprep.subr.bf16.mxu0 0
    %876 = vmatpush1.bf16.msra.mxu0 %v837
    %877 = vmatprep.subr.bf16.mxu0 0
    %878 = vmatpush1.bf16.msra.mxu0 %v838
    %879 = vmatprep.subr.bf16.mxu0 0
    %880 = vmatpush1.bf16.msra.mxu0 %v839
    %881 = vmatprep.subr.bf16.mxu0 0
    %882 = vmatpush1.bf16.msra.mxu0 %v840
    %883 = vmatprep.subr.bf16.mxu0 0
    %884 = vmatpush1.bf16.msra.mxu0 %v841
    %885 = vmatprep.subr.bf16.mxu0 0
    %886 = vmatpush1.bf16.msra.mxu0 %v842
    %887 = vmatprep.subr.bf16.mxu0 0
    %888 = vmatpush1.bf16.msra.mxu0 %v843
    %889 = vmatprep.subr.bf16.mxu0 0
    %890 = vmatpush1.bf16.msra.mxu0 %v844
    %891 = vmatprep.subr.bf16.mxu0 0
    %892 = vmatpush1.bf16.msra.mxu0 %v845
    %893 = vmatprep.subr.bf16.mxu0 0
    %894 = vmatpush1.bf16.msra.mxu0 %v846
    %895 = vmatprep.mubr.bf16.mxu0 %v720
    %896 = vmatmul.mubr.bf16.gmra.mrb[0].mxu0 %v719
    %v897 = vpop.f32.mrb[0].mxu0
    %v898 = vadd.f32 0.0, %v897
    %v899 = vpop.f32.mrb[0].mxu0
    %v900 = vpop.f32.mrb[0].mxu0
    %v901 = vadd.f32 0.0, %v900
    %v902 = vpop.f32.mrb[0].mxu0
    %903 = vmatprep.mubr.bf16.mxu0 %v722
    %904 = vmatmul.mubr.bf16.gmra.mrb[0].mxu0 %v721
    %v905 = vpop.f32.mrb[0].mxu0
    %v906 = vadd.f32 0.0, %v905
    %v907 = vpop.f32.mrb[0].mxu0
    %v908 = vpop.f32.mrb[0].mxu0
    %v909 = vadd.f32 0.0, %v908
    %v910 = vpop.f32.mrb[0].mxu0
    %911 = vmatprep.mubr.bf16.mxu0 %v724
    %912 = vmatmul.mubr.bf16.gmra.mrb[0].mxu0 %v723
    %v913 = vpop.f32.mrb[0].mxu0
    %v914 = vadd.f32 0.0, %v913
    %v915 = vpop.f32.mrb[0].mxu0
    %v916 = vpop.f32.mrb[0].mxu0
    %v917 = vadd.f32 0.0, %v916
    %v918 = vpop.f32.mrb[0].mxu0
    %919 = vmatprep.mubr.bf16.mxu0 %v726
    %920 = vmatmul.mubr.bf16.gmra.mrb[0].mxu0 %v725
    %v921 = vpop.f32.mrb[0].mxu0
    %v922 = vadd.f32 0.0, %v921
    %v923 = vpop.f32.mrb[0].mxu0
    %v924 = vpop.f32.mrb[0].mxu0
    %v925 = vadd.f32 0.0, %v924
    %v926 = vpop.f32.mrb[0].mxu0
    %927 = vmatprep.mubr.bf16.mxu0 %v728
    %928 = vmatmul.mubr.bf16.gmra.mrb[0].mxu0 %v727
    %v929 = vpop.f32.mrb[0].mxu0
    %v930 = vadd.f32 0.0, %v929
    %v931 = vpop.f32.mrb[0].mxu0
    %v932 = vpop.f32.mrb[0].mxu0
    %v933 = vadd.f32 0.0, %v932
    %v934 = vpop.f32.mrb[0].mxu0
    %935 = vmatprep.mubr.bf16.mxu0 %v730
    %936 = vmatmul.mubr.bf16.gmra.mrb[0].mxu0 %v729
    %v937 = vpop.f32.mrb[0].mxu0
    %v938 = vadd.f32 0.0, %v937
    %v939 = vpop.f32.mrb[0].mxu0
    %v940 = vpop.f32.mrb[0].mxu0
    %v941 = vadd.f32 0.0, %v940
    %v942 = vpop.f32.mrb[0].mxu0
    %943 = vmatprep.mubr.bf16.mxu0 %v732
    %944 = vmatmul.mubr.bf16.gmra.mrb[0].mxu0 %v731
    %v945 = vpop.f32.mrb[0].mxu0
    %v946 = vadd.f32 0.0, %v945
    %v947 = vpop.f32.mrb[0].mxu0
    %v948 = vpop.f32.mrb[0].mxu0
    %v949 = vadd.f32 0.0, %v948
    %v950 = vpop.f32.mrb[0].mxu0
    %951 = vmatprep.mubr.bf16.mxu0 %v734
    %952 = vmatmul.mubr.bf16.gmra.mrb[0].mxu0 %v733
    %v953 = vpop.f32.mrb[0].mxu0
    %v954 = vadd.f32 0.0, %v953
    %v955 = vpop.f32.mrb[0].mxu0
    %v956 = vpop.f32.mrb[0].mxu0
    %v957 = vadd.f32 0.0, %v956
    %v958 = vpop.f32.mrb[0].mxu0
    %959 = vdwg.mxu0
    %s960 = sld [smem:[#allocation2]]
    %v961 = vstv %s960
    %v962 = vadd.f32 %v898, %v961
    %v963 = vadd.f32 %v901, %v961
    %v964 = vadd.f32 %v906, %v961
    %v965 = vadd.f32 %v909, %v961
    %v966 = vadd.f32 %v914, %v961
    %v967 = vadd.f32 %v917, %v961
    %v968 = vadd.f32 %v922, %v961
    %v969 = vadd.f32 %v925, %v961
    %v970 = vadd.f32 %v930, %v961
    %v971 = vadd.f32 %v933, %v961
    %v972 = vadd.f32 %v938, %v961
    %v973 = vadd.f32 %v941, %v961
    %v974 = vadd.f32 %v946, %v961
    %v975 = vadd.f32 %v949, %v961
    %v976 = vadd.f32 %v954, %v961
    %v977 = vadd.f32 %v957, %v961
    %vm978 = vcmask 7168
    %979 = vst.msk [vmem:[#allocation8] sm:$0xff] %vm978, %v962
    %980 = vst.msk [vmem:[#allocation8 + $0x8] sm:$0xff] %vm978, %v963
    %981 = vst.msk [vmem:[#allocation8 + $0x10] sm:$0xff] %vm978, %v964
    %982 = vst.msk [vmem:[#allocation8 + $0x18] sm:$0xff] %vm978, %v965
    %983 = vst.msk [vmem:[#allocation8 + $0x20] sm:$0xff] %vm978, %v966
    %984 = vst.msk [vmem:[#allocation8 + $0x28] sm:$0xff] %vm978, %v967
    %985 = vst.msk [vmem:[#allocation8 + $0x30] sm:$0xff] %vm978, %v968
    %986 = vst.msk [vmem:[#allocation8 + $0x38] sm:$0xff] %vm978, %v969
    %987 = vst.msk [vmem:[#allocation8 + $0x40] sm:$0xff] %vm978, %v970
    %988 = vst.msk [vmem:[#allocation8 + $0x48] sm:$0xff] %vm978, %v971
    %989 = vst.msk [vmem:[#allocation8 + $0x50] sm:$0xff] %vm978, %v972
    %990 = vst.msk [vmem:[#allocation8 + $0x58] sm:$0xff] %vm978, %v973
    %991 = vst.msk [vmem:[#allocation8 + $0x60] sm:$0xff] %vm978, %v974
    %992 = vst.msk [vmem:[#allocation8 + $0x68] sm:$0xff] %vm978, %v975
    %993 = vst.msk [vmem:[#allocation8 + $0x70] sm:$0xff] %vm978, %v976
    %994 = vst.msk [vmem:[#allocation8 + $0x78] sm:$0xff] %vm978, %v977
    // Predicated region
    $region42: #{tpu_custom_call.1} parent=1 // pred_check
      _
    $region43: #{tpu_custom_call.1} parent=1 // pred_check_branch
      %996 = sbr.rel (0) target = $region45
    $region44: #{tpu_custom_call.1} parent=1 // pred_region
      // Predicated region
      $region46: #{tpu_custom_call.1} parent=44 // pred_check
        _
      $region47: #{tpu_custom_call.1} parent=44 // pred_check_branch
        %998 = sbr.rel (0) target = $region49
      $region48: #{tpu_custom_call.1} parent=44 // pred_region
        // Predicated region
        $region50: #{tpu_custom_call.1} parent=48 // pred_check
          _
        $region51: #{tpu_custom_call.1} parent=48 // pred_check_branch
          %1000 = sbr.rel target = $region53
        $region52: #{tpu_custom_call.1} parent=48 // pred_region
          // Predicated region
          $region65: #{tpu_custom_call.1} parent=52 // pred_check
            _
          $region66: #{tpu_custom_call.1} parent=52 // pred_check_branch
            %1015 = sbr.rel (0) target = $region68
          $region67: #{tpu_custom_call.1} parent=52 // pred_region
            loop: start=0, step=1, limit=1
            $region69: #{tpu_custom_call.1} parent=67 // loop_pre_header
              _
            $region70: #{tpu_custom_call.1} parent=67 // loop_header
              %s1018 = sphi 0, %s1022
              %p1019 = scmp.ge.s32.totalorder %s1018, 1
              %s1023 = sphi [#allocation8], [#allocation8]
              %s1024 = sphi %s7, %s7
            $region71: #{tpu_custom_call.1} parent=67 // loop_header_branch
              %1021 = sbr.rel (%p1019) target = $region75
            $region72: #{tpu_custom_call.1} parent=67 // loop_body
              %v1025 = vld [vmem:[%s1023] sm:$0x3]
              %1026 = vst [vmem:[%s1024] sm:$0x3] %v1025
            $region73: #{tpu_custom_call.1} parent=67 // loop_footer
              %s1022 = sadd.s32 1, %s1018
            $region74: #{tpu_custom_call.1} parent=67 // loop_footer_branch
              %1017 = sbr.rel target = $region70
            $region75: #{tpu_custom_call.1} parent=67 // loop_exit
              _
          $region68: #{tpu_custom_call.1} parent=52 // pred_fallthru
            _
        $region53: #{tpu_custom_call.1} parent=48 // pred_fallthru
          _
        // Predicated region
        $region54: #{tpu_custom_call.1} parent=48 // pred_check
          _
        $region55: #{tpu_custom_call.1} parent=48 // pred_check_branch
          %1002 = sbr.rel (0) target = $region57
        $region56: #{tpu_custom_call.1} parent=48 // pred_region
          loop: start=0, step=1, limit=1
          $region58: #{tpu_custom_call.1} parent=56 // loop_pre_header
            _
          $region59: #{tpu_custom_call.1} parent=56 // loop_header
            %s1005 = sphi 0, %s1009
            %p1006 = scmp.ge.s32.totalorder %s1005, 1
            %s1010 = sphi [#allocation8], [#allocation8]
            %s1011 = sphi %s7, %s7
          $region60: #{tpu_custom_call.1} parent=56 // loop_header_branch
            %1008 = sbr.rel (%p1006) target = $region64
          $region61: #{tpu_custom_call.1} parent=56 // loop_body
            %v1012 = vld [vmem:[%s1010] sm:$0x3]
            %1013 = vst [vmem:[%s1011] sm:$0x3] %v1012
          $region62: #{tpu_custom_call.1} parent=56 // loop_footer
            %s1009 = sadd.s32 1, %s1005
          $region63: #{tpu_custom_call.1} parent=56 // loop_footer_branch
            %1004 = sbr.rel target = $region59
          $region64: #{tpu_custom_call.1} parent=56 // loop_exit
            _
        $region57: #{tpu_custom_call.1} parent=48 // pred_fallthru
          _
      $region49: #{tpu_custom_call.1} parent=44 // pred_fallthru
        _
      %1027 = vnop
    $region45: #{tpu_custom_call.1} parent=1 // pred_fallthru
      _
    // Predicated region
    $region76: #{tpu_custom_call.1} parent=1 // pred_check
      _
    $region77: #{tpu_custom_call.1} parent=1 // pred_check_branch
      %1029 = sbr.rel (0) target = $region79
    $region78: #{tpu_custom_call.1} parent=1 // pred_region
      _
    $region79: #{tpu_custom_call.1} parent=1 // pred_fallthru
      _
    %1030 = vsyncpa [#allocation4], 1
    %1031 = vsyncpa [#allocation6], 1

</llo_original>
